<compile_context>
chip_gen: v6e
topology: v6e:2x2x1
jax: 0.10.0
libtpu: 0.0.40
codegen_flags: <defaults>
</compile_context>

<pallas_src>
import functools

import jax
import jax.numpy as jnp
from jax.experimental import pallas as pl
from jax.experimental.pallas import tpu as pltpu


def _round_up(a, b):
    return (a + b - 1) // b * b


# ----------------------------------------------------------------------------
# Pallas kernel: one batch element.
#   x_ref:     (1, C_in, L)        flattened zero-padded image (compute dtype)
#   w_ref:     (K*K, C_out, C_in)  conv weight, tap-major (compute dtype)
#   gamma_ref: (C_out, 1)          instance-norm scale (f32)
#   beta_ref:  (C_out, 1)          instance-norm shift (f32)
#   mask_ref:  (1, Q)              1.0 at valid (strided, non-wrapped) output lanes
#   o_ref:     (1, C_out, Q)       dense conv output over the padded-width grid
# ----------------------------------------------------------------------------
def _conv_block_kernel(x_ref, w_ref, gamma_ref, beta_ref, mask_ref, o_ref, *,
                       K, WP, Q, inv_count, eps, use_norm, act):
    x = x_ref[0]                                   # (C_in, L)

    # Conv as K*K accumulated matmuls: tap (ki,kj) is a lane-shift of the flattened
    # padded image by s = ki*WP + kj.  Output column q covers the dense (stride-1)
    # conv over the padded-width grid; invalid columns are masked out of the norm
    # stats and sliced off in the wrapper.
    acc = None
    for ki in range(K):
        for kj in range(K):
            t = ki * K + kj
            s = ki * WP + kj
            part = jnp.dot(w_ref[t], x[:, s:s + Q],
                           preferred_element_type=jnp.float32)   # (C_out, Q) f32
            acc = part if acc is None else acc + part

    if use_norm:
        m = mask_ref[...]                                         # (1, Q)
        mean = jnp.sum(acc * m, axis=1, keepdims=True) * inv_count  # (C_out, 1)
        cen = acc - mean
        var = jnp.sum(cen * cen * m, axis=1, keepdims=True) * inv_count
        scale = gamma_ref[...] * jax.lax.rsqrt(var + eps)         # (C_out, 1)
        shift = beta_ref[...] - mean * scale
        acc = acc * scale + shift                                 # fused affine

    if act == 'relu':
        acc = jnp.maximum(acc, 0.0)
    elif act == 'leaky_relu':
        acc = jnp.where(acc >= 0.0, acc, 0.2 * acc)

    o_ref[0] = acc.astype(o_ref.dtype)


# ----------------------------------------------------------------------------
# Wrapper
# ----------------------------------------------------------------------------
def conv_block_forward(x, weight, gamma=None, beta=None, *, stride=1, padding=0,
                       norm='instance', activation='relu', eps=1e-5,
                       compute_dtype=jnp.bfloat16):
    """x: (N, C_in, H, W) NCHW.  weight: (C_out, C_in, K, K) (PyTorch layout)."""
    N, C_in, H, W = x.shape
    C_out, wc, K, K2 = weight.shape
    assert wc == C_in and K == K2

    if norm == 'batch':
        # TODO(synk): BatchNorm2d (cross-batch stats + running stats) has no per-image
        # kernel equivalent here; not exercised by this module configuration.
        raise NotImplementedError("norm='batch' not implemented in the Pallas kernel")

    HP, WP = H + 2 * padding, W + 2 * padding
    Hd, Wd = HP - K + 1, WP - K + 1                  # dense (stride-1) output dims
    H_out = (HP - K) // stride + 1
    W_out = (WP - K) // stride + 1
    Q = Hd * WP                                      # dense output over padded width
    L = _round_up(HP * WP + (K - 1) * WP + (K - 1), 128)   # lane-aligned, shift-safe

    # Pad spatially, flatten, zero-extend to L lanes, cast operands to bf16.
    xp = jnp.pad(x, ((0, 0), (0, 0), (padding, padding), (padding, padding)))
    x_flat = xp.reshape(N, C_in, HP * WP)
    x_flat = jnp.pad(x_flat, ((0, 0), (0, 0), (0, L - HP * WP))).astype(compute_dtype)

    # Weight as (K*K, C_out, C_in), tap-major.
    w3 = jnp.transpose(weight, (2, 3, 0, 1)).reshape(K * K, C_out, C_in).astype(compute_dtype)

    if gamma is None:
        gamma = jnp.ones((C_out,), jnp.float32)
    if beta is None:
        beta = jnp.zeros((C_out,), jnp.float32)
    g2 = gamma.reshape(C_out, 1).astype(jnp.float32)
    b2 = beta.reshape(C_out, 1).astype(jnp.float32)

    # Valid-lane mask over the dense padded-width output grid (handles stride and
    # the right-edge wrap columns); used only for the instance-norm statistics.
    q_idx = jnp.arange(Q, dtype=jnp.int32)
    wi = q_idx % WP
    hi = q_idx // WP
    valid = ((wi % stride == 0) & ((wi // stride) < W_out) &
             (hi % stride == 0) & ((hi // stride) < H_out))
    mask = valid.astype(jnp.float32).reshape(1, Q)

    kernel = functools.partial(
        _conv_block_kernel,
        K=K, WP=WP, Q=Q,
        inv_count=1.0 / float(H_out * W_out),
        eps=float(eps),
        use_norm=(norm == 'instance'),
        act=activation,
    )

    out = pl.pallas_call(
        kernel,
        out_shape=jax.ShapeDtypeStruct((N, C_out, Q), jnp.float32),
        grid_spec=pltpu.PrefetchScalarGridSpec(
            num_scalar_prefetch=0,
            grid=(N,),
            in_specs=[
                pl.BlockSpec((1, C_in, L), lambda n: (n, 0, 0)),
                pl.BlockSpec((K * K, C_out, C_in), lambda n: (0, 0, 0)),
                pl.BlockSpec((C_out, 1), lambda n: (0, 0)),
                pl.BlockSpec((C_out, 1), lambda n: (0, 0)),
                pl.BlockSpec((1, Q), lambda n: (0, 0)),
            ],
            out_specs=pl.BlockSpec((1, C_out, Q), lambda n: (n, 0, 0)),
        ),
        compiler_params=pltpu.CompilerParams(dimension_semantics=("parallel",)),
    )(x_flat, w3, g2, b2, mask)

    # (N, C_out, Q) -> NCHW: reshape over the padded width, then strided slice.
    out = out.reshape(N, C_out, Hd, WP)
    out = out[:, :, ::stride, ::stride][:, :, :H_out, :W_out]
    return out


# ----------------------------------------------------------------------------
# Pure-JAX reference (for correctness check)
# ----------------------------------------------------------------------------
def conv_block_ref(x, weight, gamma, beta, *, stride=1, padding=0,
                   norm='instance', activation='relu', eps=1e-5):
    out = jax.lax.conv_general_dilated(
        x, weight,
        window_strides=(stride, stride),
        padding=[(padding, padding), (padding, padding)],
        dimension_numbers=('NCHW', 'OIHW', 'NCHW'),
        precision=jax.lax.Precision.HIGHEST,
    )
    if norm == 'instance':
        mean = jnp.mean(out, axis=(2, 3), keepdims=True)
        var = jnp.mean((out - mean) ** 2, axis=(2, 3), keepdims=True)
        out = (out - mean) * jax.lax.rsqrt(var + eps)
        out = out * gamma.reshape(1, -1, 1, 1) + beta.reshape(1, -1, 1, 1)
    if activation == 'relu':
        out = jnp.maximum(out, 0.0)
    elif activation == 'leaky_relu':
        out = jnp.where(out >= 0.0, out, 0.2 * out)
    return out


if __name__ == "__main__":
    # ConvBlcok(in_dim=4, out_dim=8, kernel_size=3, stride=1, padding=1,
    #           norm='instance', activation='relu')
    N, C_in, H, W = 2, 4, 16, 16
    C_out, K, stride, padding = 8, 3, 1, 1

    key = jax.random.PRNGKey(0)
    kx, kw = jax.random.split(key)
    x = jax.random.normal(kx, (N, C_in, H, W), dtype=jnp.float32)
    fan_in = C_in * K * K
    weight = jax.random.normal(kw, (C_out, C_in, K, K), dtype=jnp.float32) * (2.0 / fan_in) ** 0.5
    gamma = jnp.ones((C_out,), dtype=jnp.float32)   # PyTorch InstanceNorm2d affine init
    beta = jnp.zeros((C_out,), dtype=jnp.float32)

    out = conv_block_forward(x, weight, gamma, beta, stride=stride, padding=padding,
                             norm='instance', activation='relu')
    out = jax.block_until_ready(out)

    ref = conv_block_ref(x, weight, gamma, beta, stride=stride, padding=padding,
                         norm='instance', activation='relu')
    assert out.shape == (N, C_out, H, W), out.shape
    # bf16 matmul operands (f32 accumulation) -> looser tolerance than pure f32.
    err = float(jnp.max(jnp.abs(out - ref)))
    assert err < 5e-2, err

    print("KERNEL_OK")
</pallas_src>

<mosaic_0001>
module attributes {stable_mosaic.version = 11 : i64} {
  func.func @_conv_block_kernel(%arg0: i32, %arg1: memref<1x4x384xbf16, #tpu.memory_space<vmem>>, %arg2: memref<9x8x4xbf16, #tpu.memory_space<vmem>>, %arg3: memref<8x1xf32, #tpu.memory_space<vmem>>, %arg4: memref<8x1xf32, #tpu.memory_space<vmem>>, %arg5: memref<1x288xf32, #tpu.memory_space<vmem>>, %arg6: memref<1x8x288xf32, #tpu.memory_space<vmem>>) attributes {dimension_semantics = [#tpu.dimension_semantics<parallel>], iteration_bounds = array<i64: 2>, scalar_prefetch = 0 : i64, scratch_operands = 0 : i64, tpu.core_type = #tpu.core_type<tc>, window_params = [{transform_indices = @transform_0, window_bounds = array<i64: 1, 4, 384>}, {pipeline_mode = #tpu.pipeline_mode<synchronous>, transform_indices = @transform_1, window_bounds = array<i64: 9, 8, 4>}, {pipeline_mode = #tpu.pipeline_mode<synchronous>, transform_indices = @transform_2, window_bounds = array<i64: 8, 1>}, {pipeline_mode = #tpu.pipeline_mode<synchronous>, transform_indices = @transform_3, window_bounds = array<i64: 8, 1>}, {pipeline_mode = #tpu.pipeline_mode<synchronous>, transform_indices = @transform_4, window_bounds = array<i64: 1, 288>}, {transform_indices = @transform_5, window_bounds = array<i64: 1, 8, 288>}]} {
    %c0 = arith.constant 0 : index
    %c0_0 = arith.constant 0 : index
    %c0_1 = arith.constant 0 : index
    %0 = vector.load %arg1[%c0, %c0_0, %c0_1] : memref<1x4x384xbf16, #tpu.memory_space<vmem>>, vector<1x4x384xbf16>
    %1 = vector.shape_cast %0 : vector<1x4x384xbf16> to vector<4x384xbf16>
    %c0_2 = arith.constant 0 : index
    %c0_3 = arith.constant 0 : index
    %c0_4 = arith.constant 0 : index
    %2 = vector.load %arg2[%c0_2, %c0_3, %c0_4] : memref<9x8x4xbf16, #tpu.memory_space<vmem>>, vector<1x8x4xbf16>
    %3 = vector.shape_cast %2 : vector<1x8x4xbf16> to vector<8x4xbf16>
    %4 = vector.extract_strided_slice %1 {offsets = [0, 0], sizes = [4, 288], strides = [1, 1]} : vector<4x384xbf16> to vector<4x288xbf16>
    %cst = arith.constant dense<0.000000e+00> : vector<8x288xf32>
    %5 = tpu.matmul %3, %4, %cst {dimension_numbers = #tpu.dot_dimension_numbers<[1], [0], [0], [1], [0, 0, 1, 1], [], []>} : vector<8x4xbf16>, vector<4x288xbf16>, vector<8x288xf32> -> vector<8x288xf32>
    %c1 = arith.constant 1 : index
    %c0_5 = arith.constant 0 : index
    %c0_6 = arith.constant 0 : index
    %6 = vector.load %arg2[%c1, %c0_5, %c0_6] : memref<9x8x4xbf16, #tpu.memory_space<vmem>>, vector<1x8x4xbf16>
    %7 = vector.shape_cast %6 : vector<1x8x4xbf16> to vector<8x4xbf16>
    %8 = vector.extract_strided_slice %1 {offsets = [0, 1], sizes = [4, 288], strides = [1, 1]} : vector<4x384xbf16> to vector<4x288xbf16>
    %cst_7 = arith.constant dense<0.000000e+00> : vector<8x288xf32>
    %9 = tpu.matmul %7, %8, %cst_7 {dimension_numbers = #tpu.dot_dimension_numbers<[1], [0], [0], [1], [0, 0, 1, 1], [], []>} : vector<8x4xbf16>, vector<4x288xbf16>, vector<8x288xf32> -> vector<8x288xf32>
    %10 = arith.addf %5, %9 : vector<8x288xf32>
    %c2 = arith.constant 2 : index
    %c0_8 = arith.constant 0 : index
    %c0_9 = arith.constant 0 : index
    %11 = vector.load %arg2[%c2, %c0_8, %c0_9] : memref<9x8x4xbf16, #tpu.memory_space<vmem>>, vector<1x8x4xbf16>
    %12 = vector.shape_cast %11 : vector<1x8x4xbf16> to vector<8x4xbf16>
    %13 = vector.extract_strided_slice %1 {offsets = [0, 2], sizes = [4, 288], strides = [1, 1]} : vector<4x384xbf16> to vector<4x288xbf16>
    %cst_10 = arith.constant dense<0.000000e+00> : vector<8x288xf32>
    %14 = tpu.matmul %12, %13, %cst_10 {dimension_numbers = #tpu.dot_dimension_numbers<[1], [0], [0], [1], [0, 0, 1, 1], [], []>} : vector<8x4xbf16>, vector<4x288xbf16>, vector<8x288xf32> -> vector<8x288xf32>
    %15 = arith.addf %10, %14 : vector<8x288xf32>
    %c3 = arith.constant 3 : index
    %c0_11 = arith.constant 0 : index
    %c0_12 = arith.constant 0 : index
    %16 = vector.load %arg2[%c3, %c0_11, %c0_12] : memref<9x8x4xbf16, #tpu.memory_space<vmem>>, vector<1x8x4xbf16>
    %17 = vector.shape_cast %16 : vector<1x8x4xbf16> to vector<8x4xbf16>
    %18 = vector.extract_strided_slice %1 {offsets = [0, 18], sizes = [4, 288], strides = [1, 1]} : vector<4x384xbf16> to vector<4x288xbf16>
    %cst_13 = arith.constant dense<0.000000e+00> : vector<8x288xf32>
    %19 = tpu.matmul %17, %18, %cst_13 {dimension_numbers = #tpu.dot_dimension_numbers<[1], [0], [0], [1], [0, 0, 1, 1], [], []>} : vector<8x4xbf16>, vector<4x288xbf16>, vector<8x288xf32> -> vector<8x288xf32>
    %20 = arith.addf %15, %19 : vector<8x288xf32>
    %c4 = arith.constant 4 : index
    %c0_14 = arith.constant 0 : index
    %c0_15 = arith.constant 0 : index
    %21 = vector.load %arg2[%c4, %c0_14, %c0_15] : memref<9x8x4xbf16, #tpu.memory_space<vmem>>, vector<1x8x4xbf16>
    %22 = vector.shape_cast %21 : vector<1x8x4xbf16> to vector<8x4xbf16>
    %23 = vector.extract_strided_slice %1 {offsets = [0, 19], sizes = [4, 288], strides = [1, 1]} : vector<4x384xbf16> to vector<4x288xbf16>
    %cst_16 = arith.constant dense<0.000000e+00> : vector<8x288xf32>
    %24 = tpu.matmul %22, %23, %cst_16 {dimension_numbers = #tpu.dot_dimension_numbers<[1], [0], [0], [1], [0, 0, 1, 1], [], []>} : vector<8x4xbf16>, vector<4x288xbf16>, vector<8x288xf32> -> vector<8x288xf32>
    %25 = arith.addf %20, %24 : vector<8x288xf32>
    %c5 = arith.constant 5 : index
    %c0_17 = arith.constant 0 : index
    %c0_18 = arith.constant 0 : index
    %26 = vector.load %arg2[%c5, %c0_17, %c0_18] : memref<9x8x4xbf16, #tpu.memory_space<vmem>>, vector<1x8x4xbf16>
    %27 = vector.shape_cast %26 : vector<1x8x4xbf16> to vector<8x4xbf16>
    %28 = vector.extract_strided_slice %1 {offsets = [0, 20], sizes = [4, 288], strides = [1, 1]} : vector<4x384xbf16> to vector<4x288xbf16>
    %cst_19 = arith.constant dense<0.000000e+00> : vector<8x288xf32>
    %29 = tpu.matmul %27, %28, %cst_19 {dimension_numbers = #tpu.dot_dimension_numbers<[1], [0], [0], [1], [0, 0, 1, 1], [], []>} : vector<8x4xbf16>, vector<4x288xbf16>, vector<8x288xf32> -> vector<8x288xf32>
    %30 = arith.addf %25, %29 : vector<8x288xf32>
    %c6 = arith.constant 6 : index
    %c0_20 = arith.constant 0 : index
    %c0_21 = arith.constant 0 : index
    %31 = vector.load %arg2[%c6, %c0_20, %c0_21] : memref<9x8x4xbf16, #tpu.memory_space<vmem>>, vector<1x8x4xbf16>
    %32 = vector.shape_cast %31 : vector<1x8x4xbf16> to vector<8x4xbf16>
    %33 = vector.extract_strided_slice %1 {offsets = [0, 36], sizes = [4, 288], strides = [1, 1]} : vector<4x384xbf16> to vector<4x288xbf16>
    %cst_22 = arith.constant dense<0.000000e+00> : vector<8x288xf32>
    %34 = tpu.matmul %32, %33, %cst_22 {dimension_numbers = #tpu.dot_dimension_numbers<[1], [0], [0], [1], [0, 0, 1, 1], [], []>} : vector<8x4xbf16>, vector<4x288xbf16>, vector<8x288xf32> -> vector<8x288xf32>
    %35 = arith.addf %30, %34 : vector<8x288xf32>
    %c7 = arith.constant 7 : index
    %c0_23 = arith.constant 0 : index
    %c0_24 = arith.constant 0 : index
    %36 = vector.load %arg2[%c7, %c0_23, %c0_24] : memref<9x8x4xbf16, #tpu.memory_space<vmem>>, vector<1x8x4xbf16>
    %37 = vector.shape_cast %36 : vector<1x8x4xbf16> to vector<8x4xbf16>
    %38 = vector.extract_strided_slice %1 {offsets = [0, 37], sizes = [4, 288], strides = [1, 1]} : vector<4x384xbf16> to vector<4x288xbf16>
    %cst_25 = arith.constant dense<0.000000e+00> : vector<8x288xf32>
    %39 = tpu.matmul %37, %38, %cst_25 {dimension_numbers = #tpu.dot_dimension_numbers<[1], [0], [0], [1], [0, 0, 1, 1], [], []>} : vector<8x4xbf16>, vector<4x288xbf16>, vector<8x288xf32> -> vector<8x288xf32>
    %40 = arith.addf %35, %39 : vector<8x288xf32>
    %c8 = arith.constant 8 : index
    %c0_26 = arith.constant 0 : index
    %c0_27 = arith.constant 0 : index
    %41 = vector.load %arg2[%c8, %c0_26, %c0_27] : memref<9x8x4xbf16, #tpu.memory_space<vmem>>, vector<1x8x4xbf16>
    %42 = vector.shape_cast %41 : vector<1x8x4xbf16> to vector<8x4xbf16>
    %43 = vector.extract_strided_slice %1 {offsets = [0, 38], sizes = [4, 288], strides = [1, 1]} : vector<4x384xbf16> to vector<4x288xbf16>
    %cst_28 = arith.constant dense<0.000000e+00> : vector<8x288xf32>
    %44 = tpu.matmul %42, %43, %cst_28 {dimension_numbers = #tpu.dot_dimension_numbers<[1], [0], [0], [1], [0, 0, 1, 1], [], []>} : vector<8x4xbf16>, vector<4x288xbf16>, vector<8x288xf32> -> vector<8x288xf32>
    %45 = arith.addf %40, %44 : vector<8x288xf32>
    %c0_29 = arith.constant 0 : index
    %c0_30 = arith.constant 0 : index
    %46 = vector.load %arg5[%c0_29, %c0_30] : memref<1x288xf32, #tpu.memory_space<vmem>>, vector<1x288xf32>
    %47 = vector.broadcast %46 : vector<1x288xf32> to vector<8x288xf32>
    %48 = arith.mulf %45, %47 : vector<8x288xf32>
    %cst_31 = arith.constant dense<0.000000e+00> : vector<8xf32>
    %49 = vector.multi_reduction <add>, %48, %cst_31 [1] : vector<8x288xf32> to vector<8xf32>
    %50 = vector.shape_cast %49 : vector<8xf32> to vector<8x1xf32>
    %cst_32 = arith.constant 3.906250e-03 : f32
    %51 = vector.broadcast %cst_32 : f32 to vector<8x1xf32>
    %52 = arith.mulf %50, %51 : vector<8x1xf32>
    %53 = vector.broadcast %52 : vector<8x1xf32> to vector<8x288xf32>
    %54 = arith.subf %45, %53 : vector<8x288xf32>
    %55 = arith.mulf %54, %54 : vector<8x288xf32>
    %56 = vector.broadcast %46 : vector<1x288xf32> to vector<8x288xf32>
    %57 = arith.mulf %55, %56 : vector<8x288xf32>
    %cst_33 = arith.constant dense<0.000000e+00> : vector<8xf32>
    %58 = vector.multi_reduction <add>, %57, %cst_33 [1] : vector<8x288xf32> to vector<8xf32>
    %59 = vector.shape_cast %58 : vector<8xf32> to vector<8x1xf32>
    %cst_34 = arith.constant 3.906250e-03 : f32
    %60 = vector.broadcast %cst_34 : f32 to vector<8x1xf32>
    %61 = arith.mulf %59, %60 : vector<8x1xf32>
    %c0_35 = arith.constant 0 : index
    %c0_36 = arith.constant 0 : index
    %62 = vector.load %arg3[%c0_35, %c0_36] : memref<8x1xf32, #tpu.memory_space<vmem>>, vector<8x1xf32>
    %cst_37 = arith.constant 9.99999974E-6 : f32
    %63 = vector.broadcast %cst_37 : f32 to vector<8x1xf32>
    %64 = arith.addf %61, %63 : vector<8x1xf32>
    %65 = math.rsqrt %64 : vector<8x1xf32>
    %66 = arith.mulf %62, %65 : vector<8x1xf32>
    %c0_38 = arith.constant 0 : index
    %c0_39 = arith.constant 0 : index
    %67 = vector.load %arg4[%c0_38, %c0_39] : memref<8x1xf32, #tpu.memory_space<vmem>>, vector<8x1xf32>
    %68 = arith.mulf %52, %66 : vector<8x1xf32>
    %69 = arith.subf %67, %68 : vector<8x1xf32>
    %70 = vector.broadcast %66 : vector<8x1xf32> to vector<8x288xf32>
    %71 = arith.mulf %45, %70 : vector<8x288xf32>
    %72 = vector.broadcast %69 : vector<8x1xf32> to vector<8x288xf32>
    %73 = arith.addf %71, %72 : vector<8x288xf32>
    %cst_40 = arith.constant 0.000000e+00 : f32
    %74 = vector.broadcast %cst_40 : f32 to vector<8x288xf32>
    %75 = arith.maximumf %73, %74 : vector<8x288xf32>
    %c0_41 = arith.constant 0 : index
    %c0_42 = arith.constant 0 : index
    %c0_43 = arith.constant 0 : index
    %76 = vector.load %arg6[%c0_41, %c0_42, %c0_43] : memref<1x8x288xf32, #tpu.memory_space<vmem>>, vector<1x8x288xf32>
    %77 = vector.shape_cast %76 : vector<1x8x288xf32> to vector<8x288xf32>
    %78 = vector.shape_cast %75 : vector<8x288xf32> to vector<1x8x288xf32>
    tpu.vector_store %arg6[%c0_41, %c0_42, %c0_43], %78 {strides = array<i32>} : memref<1x8x288xf32, #tpu.memory_space<vmem>>, vector<1x8x288xf32>,
    return
  }
  func.func @transform_0(%arg0: i32) -> (i32, i32, i32) {
    %c0_i32 = arith.constant 0 : i32
    %c0_i32_0 = arith.constant 0 : i32
    %c0_i32_1 = arith.constant 0 : i32
    return %arg0, %c0_i32, %c0_i32_0 : i32, i32, i32
  }
  func.func @transform_1(%arg0: i32) -> (i32, i32, i32) {
    %c0_i32 = arith.constant 0 : i32
    %c0_i32_0 = arith.constant 0 : i32
    %c0_i32_1 = arith.constant 0 : i32
    %c0_i32_2 = arith.constant 0 : i32
    return %c0_i32, %c0_i32_0, %c0_i32_1 : i32, i32, i32
  }
  func.func @transform_2(%arg0: i32) -> (i32, i32) {
    %c0_i32 = arith.constant 0 : i32
    %c0_i32_0 = arith.constant 0 : i32
    %c0_i32_1 = arith.constant 0 : i32
    return %c0_i32, %c0_i32_0 : i32, i32
  }
  func.func @transform_3(%arg0: i32) -> (i32, i32) {
    %c0_i32 = arith.constant 0 : i32
    %c0_i32_0 = arith.constant 0 : i32
    %c0_i32_1 = arith.constant 0 : i32
    return %c0_i32, %c0_i32_0 : i32, i32
  }
  func.func @transform_4(%arg0: i32) -> (i32, i32) {
    %c0_i32 = arith.constant 0 : i32
    %c0_i32_0 = arith.constant 0 : i32
    %c0_i32_1 = arith.constant 0 : i32
    return %c0_i32, %c0_i32_0 : i32, i32
  }
  func.func @transform_5(%arg0: i32) -> (i32, i32, i32) {
    %c0_i32 = arith.constant 0 : i32
    %c0_i32_0 = arith.constant 0 : i32
    %c0_i32_1 = arith.constant 0 : i32
    return %arg0, %c0_i32, %c0_i32_0 : i32, i32, i32
  }
}

</mosaic_0001>

<llo_original>
// kernel: tpu_custom_call.1
$region0: #{tpu_custom_call.1}
  #allocation0 [shape = 'u32[]', space=smem, size = 0x4, offset = 0x4, fixed_abs, tag = 'smem constant byte address 0x4 - core index']
  #allocation1 [shape = 'u32[144,128]{1,0:T(1,128)}', space=vmem, size = 0x12000, scoped, tag = 'internal scratch']
  %s0 = inlined_call_operand.vmem [shape: bf16[2,4,384], index: 0, kind: input, shape index: {}]
  %s1 = inlined_call_operand.vmem [shape: bf16[9,8,4], index: 1, kind: input, shape index: {}]
  %s2 = inlined_call_operand.vmem [shape: f32[8,1], index: 2, kind: input, shape index: {}]
  %s3 = inlined_call_operand.vmem [shape: f32[8,1], index: 3, kind: input, shape index: {}]
  %s4 = inlined_call_operand.vmem [shape: f32[1,288], index: 4, kind: input, shape index: {}]
  %s5 = inlined_call_operand.hbm [shape: f32[2,8,288], index: 5, kind: output, shape index: {}]
  %s6 = sld [smem:[#allocation0]]
  $region53: #{tpu_custom_call.1} parent=0
    _
  %s8 = ssub.s32 1, %s6
  %s9 = scalar_select 0, %s8, %s6
  $region1: #{tpu_custom_call.1} parent=0
    #allocation2 [shape = 'u8[24576]{0}', space=vmem, size = 0x6000, scoped, tag = 'output window, operand 0']
    #allocation3 [shape = 's32[2]{0}', space=sflag, size = 0x8, scoped, tag = 'scoped memory for tpu_custom_call.1']
    %10 = vsyncpa [#allocation3], 0
    %s11 = scalar_lea.sflag [#allocation3], 1
    %12 = vsyncpa %s11, 0
    loop: start=0, step=1, limit=4
    $region2: #{tpu_custom_call.1} parent=1 // loop_pre_header
      _
    $region3: #{tpu_custom_call.1} parent=1 // loop_header
      %s14 = sphi 0, %s18
      %p15 = scmp.ge.s32.totalorder %s14, 4
      %s24 = sphi 0, %s26
      %s27 = sphi 0, %s24
      %s28 = sphi 0, %s27
      %s44 = sphi 0, %s28
      %s48 = sphi 0, %s48
      %s50 = sphi 0, %s48
      %s51 = sphi 0, %s50
      %s65 = sphi 0, %s51
      %s69 = sphi 0, %s69
      %s71 = sphi 0, %s69
      %s72 = sphi 0, %s71
      %s86 = sphi 0, %s72
      %s90 = sphi 0, %s90
      %s92 = sphi 0, %s90
      %s93 = sphi 0, %s92
      %s107 = sphi 0, %s93
      %s111 = sphi 0, %s111
      %s113 = sphi 0, %s111
      %s114 = sphi 0, %s113
      %s128 = sphi 0, %s114
      %s134 = sphi 0, %s136
      %s137 = sphi 0, %s134
      %s138 = sphi 0, %s137
      %s154 = sphi 0, %s138
    $region4: #{tpu_custom_call.1} parent=1 // loop_header_branch
      %17 = sbr.rel (%p15) target = $region8
    $region5: #{tpu_custom_call.1} parent=1 // loop_body
      %s19 = ssub.s32 %s14, 1
      %s20 = ssub.s32 %s14, 2
      %s21 = sadd.s32 %s14, 1
      %s22 = ssub.s32 %s14, %s21
      %p23 = scmp.eq.s32.totalorder %s22, 0
      %s25 = sadd.s32 %s24, 1
      %s26 = scalar_select %p23, %s24, %s25
      %p29 = pneg %p23
      %p30 = scmp.eq.s32.totalorder %s14, 1
      %p31 = por %p29, %p30
      %p32 = scmp.ne.s32.totalorder %s24, %s27
      %p33 = scmp.eq.s32.totalorder %s14, 0
      %p34 = por %p32, %p33
      %p35 = scmp.ne.s32.totalorder %s24, %s27
      %p36 = scmp.eq.s32.totalorder %s19, 1
      %p37 = por %p35, %p36
      %p38 = scmp.ne.s32.totalorder %s27, %s28
      %p39 = scmp.eq.s32.totalorder %s19, 0
      %p40 = por %p38, %p39
      %p41 = scmp.ne.s32.totalorder %s27, %s28
      %p42 = scmp.eq.s32.totalorder %s20, 1
      %p43 = por %p41, %p42
      %p45 = scmp.ne.s32.totalorder %s28, %s44
      %p46 = scmp.eq.s32.totalorder %s20, 0
      %p47 = por %p45, %p46
      %s49 = sadd.s32 %s48, 1
      %p52 = scmp.eq.s32.totalorder %s14, 1
      %p53 = scmp.ne.s32.totalorder %s48, %s50
      %p54 = scmp.eq.s32.totalorder %s14, 0
      %p55 = por %p53, %p54
      %p56 = scmp.ne.s32.totalorder %s48, %s50
      %p57 = scmp.eq.s32.totalorder %s19, 1
      %p58 = por %p56, %p57
      %p59 = scmp.ne.s32.totalorder %s50, %s51
      %p60 = scmp.eq.s32.totalorder %s19, 0
      %p61 = por %p59, %p60
      %p62 = scmp.ne.s32.totalorder %s50, %s51
      %p63 = scmp.eq.s32.totalorder %s20, 1
      %p64 = por %p62, %p63
      %p66 = scmp.ne.s32.totalorder %s51, %s65
      %p67 = scmp.eq.s32.totalorder %s20, 0
      %p68 = por %p66, %p67
      %s70 = sadd.s32 %s69, 1
      %p73 = scmp.eq.s32.totalorder %s14, 1
      %p74 = scmp.ne.s32.totalorder %s69, %s71
      %p75 = scmp.eq.s32.totalorder %s14, 0
      %p76 = por %p74, %p75
      %p77 = scmp.ne.s32.totalorder %s69, %s71
      %p78 = scmp.eq.s32.totalorder %s19, 1
      %p79 = por %p77, %p78
      %p80 = scmp.ne.s32.totalorder %s71, %s72
      %p81 = scmp.eq.s32.totalorder %s19, 0
      %p82 = por %p80, %p81
      %p83 = scmp.ne.s32.totalorder %s71, %s72
      %p84 = scmp.eq.s32.totalorder %s20, 1
      %p85 = por %p83, %p84
      %p87 = scmp.ne.s32.totalorder %s72, %s86
      %p88 = scmp.eq.s32.totalorder %s20, 0
      %p89 = por %p87, %p88
      %s91 = sadd.s32 %s90, 1
      %p94 = scmp.eq.s32.totalorder %s14, 1
      %p95 = scmp.ne.s32.totalorder %s90, %s92
      %p96 = scmp.eq.s32.totalorder %s14, 0
      %p97 = por %p95, %p96
      %p98 = scmp.ne.s32.totalorder %s90, %s92
      %p99 = scmp.eq.s32.totalorder %s19, 1
      %p100 = por %p98, %p99
      %p101 = scmp.ne.s32.totalorder %s92, %s93
      %p102 = scmp.eq.s32.totalorder %s19, 0
      %p103 = por %p101, %p102
      %p104 = scmp.ne.s32.totalorder %s92, %s93
      %p105 = scmp.eq.s32.totalorder %s20, 1
      %p106 = por %p104, %p105
      %p108 = scmp.ne.s32.totalorder %s93, %s107
      %p109 = scmp.eq.s32.totalorder %s20, 0
      %p110 = por %p108, %p109
      %s112 = sadd.s32 %s111, 1
      %p115 = scmp.eq.s32.totalorder %s14, 1
      %p116 = scmp.ne.s32.totalorder %s111, %s113
      %p117 = scmp.eq.s32.totalorder %s14, 0
      %p118 = por %p116, %p117
      %p119 = scmp.ne.s32.totalorder %s111, %s113
      %p120 = scmp.eq.s32.totalorder %s19, 1
      %p121 = por %p119, %p120
      %p122 = scmp.ne.s32.totalorder %s113, %s114
      %p123 = scmp.eq.s32.totalorder %s19, 0
      %p124 = por %p122, %p123
      %p125 = scmp.ne.s32.totalorder %s113, %s114
      %p126 = scmp.eq.s32.totalorder %s20, 1
      %p127 = por %p125, %p126
      %p129 = scmp.ne.s32.totalorder %s114, %s128
      %p130 = scmp.eq.s32.totalorder %s20, 0
      %p131 = por %p129, %p130
      %s132 = ssub.s32 %s14, %s21
      %p133 = scmp.eq.s32.totalorder %s132, 0
      %s135 = sadd.s32 %s134, 1
      %s136 = scalar_select %p133, %s134, %s135
      %p139 = pneg %p133
      %p140 = scmp.eq.s32.totalorder %s14, 1
      %p141 = por %p139, %p140
      %p142 = scmp.ne.s32.totalorder %s134, %s137
      %p143 = scmp.eq.s32.totalorder %s14, 0
      %p144 = por %p142, %p143
      %p145 = scmp.ne.s32.totalorder %s134, %s137
      %p146 = scmp.eq.s32.totalorder %s19, 1
      %p147 = por %p145, %p146
      %p148 = scmp.ne.s32.totalorder %s137, %s138
      %p149 = scmp.eq.s32.totalorder %s19, 0
      %p150 = por %p148, %p149
      %p151 = scmp.ne.s32.totalorder %s137, %s138
      %p152 = scmp.eq.s32.totalorder %s20, 1
      %p153 = por %p151, %p152
      %p155 = scmp.ne.s32.totalorder %s138, %s154
      %p156 = scmp.eq.s32.totalorder %s20, 0
      %p157 = por %p155, %p156
      %p158 = scmp.le.s32.totalorder 1, %s14
      %p159 = scmp.lt.s32.totalorder %s14, 3
      %p160 = pnand %p158, %p159
      %p161 = pneg %p160
      // Predicated region
      $region9: #{tpu_custom_call.1} parent=5 // pred_check
        _
      $region10: #{tpu_custom_call.1} parent=5 // pred_check_branch
        %163 = sbr.rel (%p160) target = $region12
      $region11: #{tpu_custom_call.1} parent=5 // pred_region
        %s164 = ssub.s32 %s14, 1
        // Predicated region
        $region13: #{tpu_custom_call.1} parent=11 // pred_check
          %p165 = pneg %p61
        $region14: #{tpu_custom_call.1} parent=11 // pred_check_branch
          %167 = sbr.rel (%p165) target = $region16
        $region15: #{tpu_custom_call.1} parent=11 // pred_region
          _
        $region16: #{tpu_custom_call.1} parent=11 // pred_fallthru
          _
        // Predicated region
        $region17: #{tpu_custom_call.1} parent=11 // pred_check
          %p168 = pneg %p82
        $region18: #{tpu_custom_call.1} parent=11 // pred_check_branch
          %170 = sbr.rel (%p168) target = $region20
        $region19: #{tpu_custom_call.1} parent=11 // pred_region
          _
        $region20: #{tpu_custom_call.1} parent=11 // pred_fallthru
          _
        // Predicated region
        $region21: #{tpu_custom_call.1} parent=11 // pred_check
          %p171 = pneg %p103
        $region22: #{tpu_custom_call.1} parent=11 // pred_check_branch
          %173 = sbr.rel (%p171) target = $region24
        $region23: #{tpu_custom_call.1} parent=11 // pred_region
          _
        $region24: #{tpu_custom_call.1} parent=11 // pred_fallthru
          _
        // Predicated region
        $region25: #{tpu_custom_call.1} parent=11 // pred_check
          %p174 = pneg %p124
        $region26: #{tpu_custom_call.1} parent=11 // pred_check_branch
          %176 = sbr.rel (%p174) target = $region28
        $region27: #{tpu_custom_call.1} parent=11 // pred_region
          _
        $region28: #{tpu_custom_call.1} parent=11 // pred_fallthru
          _
      $region12: #{tpu_custom_call.1} parent=5 // pred_fallthru
        _
      %p177 = scmp.lt.s32.totalorder %s14, 2
      // Predicated region
      $region29: #{tpu_custom_call.1} parent=5 // pred_check
        %p178 = pneg %p177
      $region30: #{tpu_custom_call.1} parent=5 // pred_check_branch
        %180 = sbr.rel (%p178) target = $region32
      $region31: #{tpu_custom_call.1} parent=5 // pred_region
        // Predicated region
        $region33: #{tpu_custom_call.1} parent=31 // pred_check
          %p181 = pneg %p34
        $region34: #{tpu_custom_call.1} parent=31 // pred_check_branch
          %183 = sbr.rel (%p181) target = $region36
        $region35: #{tpu_custom_call.1} parent=31 // pred_region
          %p184 = scmp.lt.s32.totalorder %s14, 1
          %s185 = scalar_select %p184, %s14, 1
          %s186 = smul.addr %s185, 3
          %s187 = smul.addr %s186, 2
          %s188 = scalar_lea.vmem %s0, %s187
        $region36: #{tpu_custom_call.1} parent=31 // pred_fallthru
          _
      $region32: #{tpu_custom_call.1} parent=5 // pred_fallthru
        _
      %p189 = scmp.le.s32.totalorder 1, %s14
      %p190 = scmp.lt.s32.totalorder %s14, 3
      %p191 = pnand %p189, %p190
      %p192 = pneg %p191
      // Predicated region
      $region37: #{tpu_custom_call.1} parent=5 // pred_check
        _
      $region38: #{tpu_custom_call.1} parent=5 // pred_check_branch
        %194 = sbr.rel (%p191) target = $region40
      $region39: #{tpu_custom_call.1} parent=5 // pred_region
        %s195 = ssub.s32 %s14, 1
        %p196 = scmp.lt.s32.totalorder %s19, 1
        %s197 = scalar_select %p196, %s19, 1
        %s198 = smul.addr %s197, 3
        %s199 = smul.addr %s198, 2
        %s200 = scalar_lea.vmem %s0, %s199
        %p201 = pneg %p40
        %p202 = pneg %p37
        %p203 = pneg %p61
        %p204 = pneg %p58
        %p205 = pneg %p82
        %p206 = pneg %p79
        %p207 = pneg %p103
        %p208 = pneg %p100
        %p209 = pneg %p124
        %p210 = pneg %p121
        %p211 = pneg %p150
        %p212 = pneg %p147
        %s213 = sand.u32 %s137, 1
        %s214 = scalar_lea.sflag [#allocation3], %s213
        %s215 = sand.u32 %s137, 1
        %s216 = smul.addr %s215, 24
        %s217 = scalar_lea.vmem [#allocation2], %s216
        %p218 = scmp.lt.s32.totalorder %s19, 1
        %s219 = scalar_select %p218, %s19, 1
        %s220 = smul.addr %s219, 3
        %s221 = smul.addr %s220, 2
        %s222 = scalar_lea.vmem %s0, %s221
        %v224 = vld [vmem:[%s222] sm:$0x3f]
        %v225 = vld [vmem:[%s1] sm:$0xf]
        %s226 = scalar_lea.vmem %s1, 4
        %v227 = vld [vmem:[%s226] sm:$0xf]
        %v229 = vcombine.high %v224, %v224
        %v231 = vunpack.c.l.s4 1983009808
        %v232 = vunpack.c.0.s8 %v231
        %v233 = vlaneseq
        %v234 = vshrl.u32 %v233, 7
        %v235 = vsub.s32 %v232, %v234
        %v236 = vrot.slane %v224, %v235
        %v238 = vunpack.c.l.s4 1983009808
        %v239 = vunpack.c.0.s8 %v238
        %v240 = vlaneseq
        %v241 = vshrl.u32 %v240, 7
        %v242 = vsub.s32 %v239, %v241
        %v243 = vrot.slane %v229, %v242
        %v244 = vcombine.high %v236, %v236
        %245 = vrot.lane.b32.xlu0 %v236, 127
        %v246 = vpop.permute.xlu0 %245
        %247 = vrot.lane.b32.xlu0 %v244, 127
        %v248 = vpop.permute.xlu0 %247
        %249 = vrot.lane.b32.xlu0 %v243, 127
        %v250 = vpop.permute.xlu0 %249
        %vm251 = vcmask 1039360
        %v252 = vsel %vm251, %v246, %v248
        %v253 = vsel %vm251, %v248, %v250
        %vm254 = vcmask 31744
        %v256 = vsel %vm254, %v227, 0
        %vm258 = vcmask 1041408
        %v260 = vsel %vm258, %v252, 0
        %v263 = vsel %vm258, %v253, 0
        %v266 = vsel %vm258, %v250, 0
        %268 = vmatprep.subr.bf16.mxu0 0
        %269 = vmatpush1.bf16.msra.mxu0 0
        %270 = vmatprep.subr.bf16.mxu0 0
        %271 = vmatpush1.bf16.msra.mxu0 0
        %272 = vmatprep.subr.bf16.mxu0 0
        %273 = vmatpush1.bf16.msra.mxu0 0
        %274 = vmatprep.subr.bf16.mxu0 0
        %275 = vmatpush1.bf16.msra.mxu0 0
        %276 = vmatprep.subr.bf16.mxu0 0
        %277 = vmatpush1.bf16.msra.mxu0 0
        %278 = vmatprep.subr.bf16.mxu0 0
        %279 = vmatpush1.bf16.msra.mxu0 0
        %280 = vmatprep.subr.bf16.mxu0 0
        %281 = vmatpush1.bf16.msra.mxu0 0
        %282 = vmatprep.subr.bf16.mxu0 %v263
        %283 = vmatpush1.bf16.msra.mxu0 %v260
        %284 = vmatprep.subr.bf16.mxu0 0
        %285 = vmatpush2.bf16.msra.mxu0 0
        %286 = vmatprep.subr.bf16.mxu0 0
        %287 = vmatpush2.bf16.msra.mxu0 0
        %288 = vmatprep.subr.bf16.mxu0 0
        %289 = vmatpush2.bf16.msra.mxu0 0
        %290 = vmatprep.subr.bf16.mxu0 0
        %291 = vmatpush2.bf16.msra.mxu0 0
        %292 = vmatprep.subr.bf16.mxu0 0
        %293 = vmatpush2.bf16.msra.mxu0 0
        %294 = vmatprep.subr.bf16.mxu0 0
        %295 = vmatpush2.bf16.msra.mxu0 0
        %296 = vmatprep.subr.bf16.mxu0 0
        %297 = vmatpush2.bf16.msra.mxu0 0
        %298 = vmatprep.subr.bf16.mxu0 0
        %299 = vmatpush2.bf16.msra.mxu0 0
        %300 = vmatprep.mubr.bf16.mxu0 0
        %301 = vmatmul.mubr.bf16.gmra.mxu0 %v256
        %v302 = vpop.f32.mrf.mxu0
        %v303 = vadd.f32 0.0, %v302
        %v304 = vpop.f32.mrf.mxu0
        %v305 = vadd.f32 0.0, %v304
        %v306 = vpop.f32.mrf.mxu0
        %v307 = vpop.f32.mrf.mxu0
        %308 = vdwg.mxu0
        %309 = vmatprep.subr.bf16.mxu0 0
        %310 = vmatpush1.bf16.msra.mxu0 0
        %311 = vmatprep.subr.bf16.mxu0 0
        %312 = vmatpush1.bf16.msra.mxu0 0
        %313 = vmatprep.subr.bf16.mxu0 0
        %314 = vmatpush1.bf16.msra.mxu0 0
        %315 = vmatprep.subr.bf16.mxu0 0
        %316 = vmatpush1.bf16.msra.mxu0 0
        %317 = vmatprep.subr.bf16.mxu0 0
        %318 = vmatpush1.bf16.msra.mxu0 0
        %319 = vmatprep.subr.bf16.mxu0 0
        %320 = vmatpush1.bf16.msra.mxu0 0
        %321 = vmatprep.subr.bf16.mxu0 0
        %322 = vmatpush1.bf16.msra.mxu0 0
        %323 = vmatprep.subr.bf16.mxu0 0
        %324 = vmatpush1.bf16.msra.mxu0 %v266
        %325 = vmatprep.subr.bf16.mxu0 0
        %326 = vmatpush2.bf16.msra.mxu0 0
        %327 = vmatprep.subr.bf16.mxu0 0
        %328 = vmatpush2.bf16.msra.mxu0 0
        %329 = vmatprep.subr.bf16.mxu0 0
        %330 = vmatpush2.bf16.msra.mxu0 0
        %331 = vmatprep.subr.bf16.mxu0 0
        %332 = vmatpush2.bf16.msra.mxu0 0
        %333 = vmatprep.subr.bf16.mxu0 0
        %334 = vmatpush2.bf16.msra.mxu0 0
        %335 = vmatprep.subr.bf16.mxu0 0
        %336 = vmatpush2.bf16.msra.mxu0 0
        %337 = vmatprep.subr.bf16.mxu0 0
        %338 = vmatpush2.bf16.msra.mxu0 0
        %339 = vmatprep.subr.bf16.mxu0 0
        %340 = vmatpush2.bf16.msra.mxu0 0
        %341 = vmatprep.mubr.bf16.mxu0 0
        %342 = vmatmul.mubr.bf16.gmra.mxu0 %v256
        %v343 = vpop.f32.mrf.mxu0
        %v344 = vadd.f32 0.0, %v343
        %v345 = vpop.f32.mrf.mxu0
        %v346 = vpop.f32.mrf.mxu0
        %v347 = vpop.f32.mrf.mxu0
        %348 = vdwg.mxu0
        %v350 = vsel %vm254, %v225, 0
        %v353 = vsel %vm258, %v236, 0
        %v356 = vsel %vm258, %v244, 0
        %v359 = vsel %vm258, %v243, 0
        %361 = vmatprep.subr.bf16.mxu0 0
        %362 = vmatpush1.bf16.msra.mxu0 0
        %363 = vmatprep.subr.bf16.mxu0 0
        %364 = vmatpush1.bf16.msra.mxu0 0
        %365 = vmatprep.subr.bf16.mxu0 0
        %366 = vmatpush1.bf16.msra.mxu0 0
        %367 = vmatprep.subr.bf16.mxu0 0
        %368 = vmatpush1.bf16.msra.mxu0 0
        %369 = vmatprep.subr.bf16.mxu0 0
        %370 = vmatpush1.bf16.msra.mxu0 0
        %371 = vmatprep.subr.bf16.mxu0 0
        %372 = vmatpush1.bf16.msra.mxu0 0
        %373 = vmatprep.subr.bf16.mxu0 0
        %374 = vmatpush1.bf16.msra.mxu0 0
        %375 = vmatprep.subr.bf16.mxu0 %v356
        %376 = vmatpush1.bf16.msra.mxu0 %v353
        %377 = vmatprep.subr.bf16.mxu0 0
        %378 = vmatpush2.bf16.msra.mxu0 0
        %379 = vmatprep.subr.bf16.mxu0 0
        %380 = vmatpush2.bf16.msra.mxu0 0
        %381 = vmatprep.subr.bf16.mxu0 0
        %382 = vmatpush2.bf16.msra.mxu0 0
        %383 = vmatprep.subr.bf16.mxu0 0
        %384 = vmatpush2.bf16.msra.mxu0 0
        %385 = vmatprep.subr.bf16.mxu0 0
        %386 = vmatpush2.bf16.msra.mxu0 0
        %387 = vmatprep.subr.bf16.mxu0 0
        %388 = vmatpush2.bf16.msra.mxu0 0
        %389 = vmatprep.subr.bf16.mxu0 0
        %390 = vmatpush2.bf16.msra.mxu0 0
        %391 = vmatprep.subr.bf16.mxu0 0
        %392 = vmatpush2.bf16.msra.mxu0 0
        %393 = vmatprep.mubr.bf16.mxu0 0
        %394 = vmatmul.mubr.bf16.gmra.mxu0 %v350
        %v395 = vpop.f32.mrf.mxu0
        %v396 = vadd.f32 %v303, %v395
        %v397 = vpop.f32.mrf.mxu0
        %v398 = vadd.f32 %v305, %v397
        %v399 = vpop.f32.mrf.mxu0
        %v400 = vpop.f32.mrf.mxu0
        %401 = vdwg.mxu0
        %402 = vmatprep.subr.bf16.mxu0 0
        %403 = vmatpush1.bf16.msra.mxu0 0
        %404 = vmatprep.subr.bf16.mxu0 0
        %405 = vmatpush1.bf16.msra.mxu0 0
        %406 = vmatprep.subr.bf16.mxu0 0
        %407 = vmatpush1.bf16.msra.mxu0 0
        %408 = vmatprep.subr.bf16.mxu0 0
        %409 = vmatpush1.bf16.msra.mxu0 0
        %410 = vmatprep.subr.bf16.mxu0 0
        %411 = vmatpush1.bf16.msra.mxu0 0
        %412 = vmatprep.subr.bf16.mxu0 0
        %413 = vmatpush1.bf16.msra.mxu0 0
        %414 = vmatprep.subr.bf16.mxu0 0
        %415 = vmatpush1.bf16.msra.mxu0 0
        %416 = vmatprep.subr.bf16.mxu0 0
        %417 = vmatpush1.bf16.msra.mxu0 %v359
        %418 = vmatprep.subr.bf16.mxu0 0
        %419 = vmatpush2.bf16.msra.mxu0 0
        %420 = vmatprep.subr.bf16.mxu0 0
        %421 = vmatpush2.bf16.msra.mxu0 0
        %422 = vmatprep.subr.bf16.mxu0 0
        %423 = vmatpush2.bf16.msra.mxu0 0
        %424 = vmatprep.subr.bf16.mxu0 0
        %425 = vmatpush2.bf16.msra.mxu0 0
        %426 = vmatprep.subr.bf16.mxu0 0
        %427 = vmatpush2.bf16.msra.mxu0 0
        %428 = vmatprep.subr.bf16.mxu0 0
        %429 = vmatpush2.bf16.msra.mxu0 0
        %430 = vmatprep.subr.bf16.mxu0 0
        %431 = vmatpush2.bf16.msra.mxu0 0
        %432 = vmatprep.subr.bf16.mxu0 0
        %433 = vmatpush2.bf16.msra.mxu0 0
        %434 = vmatprep.mubr.bf16.mxu0 0
        %435 = vmatmul.mubr.bf16.gmra.mxu0 %v350
        %v436 = vpop.f32.mrf.mxu0
        %v437 = vadd.f32 %v344, %v436
        %v438 = vpop.f32.mrf.mxu0
        %v439 = vpop.f32.mrf.mxu0
        %v440 = vpop.f32.mrf.mxu0
        %441 = vdwg.mxu0
        %s442 = scalar_lea.vmem %s1, 8
        %v443 = vld [vmem:[%s442] sm:$0xf]
        %444 = vrot.lane.b32.xlu0 %v236, 126
        %v445 = vpop.permute.xlu0 %444
        %446 = vrot.lane.b32.xlu0 %v244, 126
        %v447 = vpop.permute.xlu0 %446
        %448 = vrot.lane.b32.xlu0 %v243, 126
        %v449 = vpop.permute.xlu0 %448
        %vm450 = vcmask 1031168
        %v451 = vsel %vm450, %v445, %v447
        %v452 = vsel %vm450, %v447, %v449
        %v454 = vsel %vm254, %v443, 0
        %v457 = vsel %vm258, %v451, 0
        %v460 = vsel %vm258, %v452, 0
        %v463 = vsel %vm258, %v449, 0
        %465 = vmatprep.subr.bf16.mxu0 0
        %466 = vmatpush1.bf16.msra.mxu0 0
        %467 = vmatprep.subr.bf16.mxu0 0
        %468 = vmatpush1.bf16.msra.mxu0 0
        %469 = vmatprep.subr.bf16.mxu0 0
        %470 = vmatpush1.bf16.msra.mxu0 0
        %471 = vmatprep.subr.bf16.mxu0 0
        %472 = vmatpush1.bf16.msra.mxu0 0
        %473 = vmatprep.subr.bf16.mxu0 0
        %474 = vmatpush1.bf16.msra.mxu0 0
        %475 = vmatprep.subr.bf16.mxu0 0
        %476 = vmatpush1.bf16.msra.mxu0 0
        %477 = vmatprep.subr.bf16.mxu0 0
        %478 = vmatpush1.bf16.msra.mxu0 0
        %479 = vmatprep.subr.bf16.mxu0 %v460
        %480 = vmatpush1.bf16.msra.mxu0 %v457
        %481 = vmatprep.subr.bf16.mxu0 0
        %482 = vmatpush2.bf16.msra.mxu0 0
        %483 = vmatprep.subr.bf16.mxu0 0
        %484 = vmatpush2.bf16.msra.mxu0 0
        %485 = vmatprep.subr.bf16.mxu0 0
        %486 = vmatpush2.bf16.msra.mxu0 0
        %487 = vmatprep.subr.bf16.mxu0 0
        %488 = vmatpush2.bf16.msra.mxu0 0
        %489 = vmatprep.subr.bf16.mxu0 0
        %490 = vmatpush2.bf16.msra.mxu0 0
        %491 = vmatprep.subr.bf16.mxu0 0
        %492 = vmatpush2.bf16.msra.mxu0 0
        %493 = vmatprep.subr.bf16.mxu0 0
        %494 = vmatpush2.bf16.msra.mxu0 0
        %495 = vmatprep.subr.bf16.mxu0 0
        %496 = vmatpush2.bf16.msra.mxu0 0
        %497 = vmatprep.mubr.bf16.mxu0 0
        %498 = vmatmul.mubr.bf16.gmra.mxu0 %v454
        %v499 = vpop.f32.mrf.mxu0
        %v500 = vadd.f32 0.0, %v499
        %v501 = vpop.f32.mrf.mxu0
        %v502 = vadd.f32 0.0, %v501
        %v503 = vpop.f32.mrf.mxu0
        %v504 = vpop.f32.mrf.mxu0
        %505 = vdwg.mxu0
        %506 = vmatprep.subr.bf16.mxu0 0
        %507 = vmatpush1.bf16.msra.mxu0 0
        %508 = vmatprep.subr.bf16.mxu0 0
        %509 = vmatpush1.bf16.msra.mxu0 0
        %510 = vmatprep.subr.bf16.mxu0 0
        %511 = vmatpush1.bf16.msra.mxu0 0
        %512 = vmatprep.subr.bf16.mxu0 0
        %513 = vmatpush1.bf16.msra.mxu0 0
        %514 = vmatprep.subr.bf16.mxu0 0
        %515 = vmatpush1.bf16.msra.mxu0 0
        %516 = vmatprep.subr.bf16.mxu0 0
        %517 = vmatpush1.bf16.msra.mxu0 0
        %518 = vmatprep.subr.bf16.mxu0 0
        %519 = vmatpush1.bf16.msra.mxu0 0
        %520 = vmatprep.subr.bf16.mxu0 0
        %521 = vmatpush1.bf16.msra.mxu0 %v463
        %522 = vmatprep.subr.bf16.mxu0 0
        %523 = vmatpush2.bf16.msra.mxu0 0
        %524 = vmatprep.subr.bf16.mxu0 0
        %525 = vmatpush2.bf16.msra.mxu0 0
        %526 = vmatprep.subr.bf16.mxu0 0
        %527 = vmatpush2.bf16.msra.mxu0 0
        %528 = vmatprep.subr.bf16.mxu0 0
        %529 = vmatpush2.bf16.msra.mxu0 0
        %530 = vmatprep.subr.bf16.mxu0 0
        %531 = vmatpush2.bf16.msra.mxu0 0
        %532 = vmatprep.subr.bf16.mxu0 0
        %533 = vmatpush2.bf16.msra.mxu0 0
        %534 = vmatprep.subr.bf16.mxu0 0
        %535 = vmatpush2.bf16.msra.mxu0 0
        %536 = vmatprep.subr.bf16.mxu0 0
        %537 = vmatpush2.bf16.msra.mxu0 0
        %538 = vmatprep.mubr.bf16.mxu0 0
        %539 = vmatmul.mubr.bf16.gmra.mxu0 %v454
        %v540 = vpop.f32.mrf.mxu0
        %v541 = vadd.f32 0.0, %v540
        %v542 = vpop.f32.mrf.mxu0
        %v543 = vpop.f32.mrf.mxu0
        %v544 = vpop.f32.mrf.mxu0
        %545 = vdwg.mxu0
        %v546 = vadd.f32 %v396, %v500
        %v547 = vadd.f32 %v398, %v502
        %v548 = vadd.f32 %v437, %v541
        %s549 = scalar_lea.vmem %s1, 12
        %v550 = vld [vmem:[%s549] sm:$0xf]
        %551 = vrot.lane.b32.xlu0 %v236, 110
        %v552 = vpop.permute.xlu0 %551
        %553 = vrot.lane.b32.xlu0 %v244, 110
        %v554 = vpop.permute.xlu0 %553
        %555 = vrot.lane.b32.xlu0 %v243, 110
        %v556 = vpop.permute.xlu0 %555
        %vm557 = vcmask 900096
        %v558 = vsel %vm557, %v552, %v554
        %v559 = vsel %vm557, %v554, %v556
        %v561 = vsel %vm254, %v550, 0
        %v564 = vsel %vm258, %v558, 0
        %v567 = vsel %vm258, %v559, 0
        %v570 = vsel %vm258, %v556, 0
        %572 = vmatprep.subr.bf16.mxu0 0
        %573 = vmatpush1.bf16.msra.mxu0 0
        %574 = vmatprep.subr.bf16.mxu0 0
        %575 = vmatpush1.bf16.msra.mxu0 0
        %576 = vmatprep.subr.bf16.mxu0 0
        %577 = vmatpush1.bf16.msra.mxu0 0
        %578 = vmatprep.subr.bf16.mxu0 0
        %579 = vmatpush1.bf16.msra.mxu0 0
        %580 = vmatprep.subr.bf16.mxu0 0
        %581 = vmatpush1.bf16.msra.mxu0 0
        %582 = vmatprep.subr.bf16.mxu0 0
        %583 = vmatpush1.bf16.msra.mxu0 0
        %584 = vmatprep.subr.bf16.mxu0 0
        %585 = vmatpush1.bf16.msra.mxu0 0
        %586 = vmatprep.subr.bf16.mxu0 %v567
        %587 = vmatpush1.bf16.msra.mxu0 %v564
        %588 = vmatprep.subr.bf16.mxu0 0
        %589 = vmatpush2.bf16.msra.mxu0 0
        %590 = vmatprep.subr.bf16.mxu0 0
        %591 = vmatpush2.bf16.msra.mxu0 0
        %592 = vmatprep.subr.bf16.mxu0 0
        %593 = vmatpush2.bf16.msra.mxu0 0
        %594 = vmatprep.subr.bf16.mxu0 0
        %595 = vmatpush2.bf16.msra.mxu0 0
        %596 = vmatprep.subr.bf16.mxu0 0
        %597 = vmatpush2.bf16.msra.mxu0 0
        %598 = vmatprep.subr.bf16.mxu0 0
        %599 = vmatpush2.bf16.msra.mxu0 0
        %600 = vmatprep.subr.bf16.mxu0 0
        %601 = vmatpush2.bf16.msra.mxu0 0
        %602 = vmatprep.subr.bf16.mxu0 0
        %603 = vmatpush2.bf16.msra.mxu0 0
        %604 = vmatprep.mubr.bf16.mxu0 0
        %605 = vmatmul.mubr.bf16.gmra.mxu0 %v561
        %v606 = vpop.f32.mrf.mxu0
        %v607 = vadd.f32 0.0, %v606
        %v608 = vpop.f32.mrf.mxu0
        %v609 = vadd.f32 0.0, %v608
        %v610 = vpop.f32.mrf.mxu0
        %v611 = vpop.f32.mrf.mxu0
        %612 = vdwg.mxu0
        %613 = vmatprep.subr.bf16.mxu0 0
        %614 = vmatpush1.bf16.msra.mxu0 0
        %615 = vmatprep.subr.bf16.mxu0 0
        %616 = vmatpush1.bf16.msra.mxu0 0
        %617 = vmatprep.subr.bf16.mxu0 0
        %618 = vmatpush1.bf16.msra.mxu0 0
        %619 = vmatprep.subr.bf16.mxu0 0
        %620 = vmatpush1.bf16.msra.mxu0 0
        %621 = vmatprep.subr.bf16.mxu0 0
        %622 = vmatpush1.bf16.msra.mxu0 0
        %623 = vmatprep.subr.bf16.mxu0 0
        %624 = vmatpush1.bf16.msra.mxu0 0
        %625 = vmatprep.subr.bf16.mxu0 0
        %626 = vmatpush1.bf16.msra.mxu0 0
        %627 = vmatprep.subr.bf16.mxu0 0
        %628 = vmatpush1.bf16.msra.mxu0 %v570
        %629 = vmatprep.subr.bf16.mxu0 0
        %630 = vmatpush2.bf16.msra.mxu0 0
        %631 = vmatprep.subr.bf16.mxu0 0
        %632 = vmatpush2.bf16.msra.mxu0 0
        %633 = vmatprep.subr.bf16.mxu0 0
        %634 = vmatpush2.bf16.msra.mxu0 0
        %635 = vmatprep.subr.bf16.mxu0 0
        %636 = vmatpush2.bf16.msra.mxu0 0
        %637 = vmatprep.subr.bf16.mxu0 0
        %638 = vmatpush2.bf16.msra.mxu0 0
        %639 = vmatprep.subr.bf16.mxu0 0
        %640 = vmatpush2.bf16.msra.mxu0 0
        %641 = vmatprep.subr.bf16.mxu0 0
        %642 = vmatpush2.bf16.msra.mxu0 0
        %643 = vmatprep.subr.bf16.mxu0 0
        %644 = vmatpush2.bf16.msra.mxu0 0
        %645 = vmatprep.mubr.bf16.mxu0 0
        %646 = vmatmul.mubr.bf16.gmra.mxu0 %v561
        %v647 = vpop.f32.mrf.mxu0
        %v648 = vadd.f32 0.0, %v647
        %v649 = vpop.f32.mrf.mxu0
        %v650 = vpop.f32.mrf.mxu0
        %v651 = vpop.f32.mrf.mxu0
        %652 = vdwg.mxu0
        %v653 = vadd.f32 %v546, %v607
        %v654 = vadd.f32 %v547, %v609
        %v655 = vadd.f32 %v548, %v648
        %s656 = scalar_lea.vmem %s1, 16
        %v657 = vld [vmem:[%s656] sm:$0xf]
        %658 = vrot.lane.b32.xlu0 %v236, 109
        %v659 = vpop.permute.xlu0 %658
        %660 = vrot.lane.b32.xlu0 %v244, 109
        %v661 = vpop.permute.xlu0 %660
        %662 = vrot.lane.b32.xlu0 %v243, 109
        %v663 = vpop.permute.xlu0 %662
        %vm664 = vcmask 891904
        %v665 = vsel %vm664, %v659, %v661
        %v666 = vsel %vm664, %v661, %v663
        %v668 = vsel %vm254, %v657, 0
        %v671 = vsel %vm258, %v665, 0
        %v674 = vsel %vm258, %v666, 0
        %v677 = vsel %vm258, %v663, 0
        %679 = vmatprep.subr.bf16.mxu0 0
        %680 = vmatpush1.bf16.msra.mxu0 0
        %681 = vmatprep.subr.bf16.mxu0 0
        %682 = vmatpush1.bf16.msra.mxu0 0
        %683 = vmatprep.subr.bf16.mxu0 0
        %684 = vmatpush1.bf16.msra.mxu0 0
        %685 = vmatprep.subr.bf16.mxu0 0
        %686 = vmatpush1.bf16.msra.mxu0 0
        %687 = vmatprep.subr.bf16.mxu0 0
        %688 = vmatpush1.bf16.msra.mxu0 0
        %689 = vmatprep.subr.bf16.mxu0 0
        %690 = vmatpush1.bf16.msra.mxu0 0
        %691 = vmatprep.subr.bf16.mxu0 0
        %692 = vmatpush1.bf16.msra.mxu0 0
        %693 = vmatprep.subr.bf16.mxu0 %v674
        %694 = vmatpush1.bf16.msra.mxu0 %v671
        %695 = vmatprep.subr.bf16.mxu0 0
        %696 = vmatpush2.bf16.msra.mxu0 0
        %697 = vmatprep.subr.bf16.mxu0 0
        %698 = vmatpush2.bf16.msra.mxu0 0
        %699 = vmatprep.subr.bf16.mxu0 0
        %700 = vmatpush2.bf16.msra.mxu0 0
        %701 = vmatprep.subr.bf16.mxu0 0
        %702 = vmatpush2.bf16.msra.mxu0 0
        %703 = vmatprep.subr.bf16.mxu0 0
        %704 = vmatpush2.bf16.msra.mxu0 0
        %705 = vmatprep.subr.bf16.mxu0 0
        %706 = vmatpush2.bf16.msra.mxu0 0
        %707 = vmatprep.subr.bf16.mxu0 0
        %708 = vmatpush2.bf16.msra.mxu0 0
        %709 = vmatprep.subr.bf16.mxu0 0
        %710 = vmatpush2.bf16.msra.mxu0 0
        %711 = vmatprep.mubr.bf16.mxu0 0
        %712 = vmatmul.mubr.bf16.gmra.mxu0 %v668
        %v713 = vpop.f32.mrf.mxu0
        %v714 = vadd.f32 0.0, %v713
        %v715 = vpop.f32.mrf.mxu0
        %v716 = vadd.f32 0.0, %v715
        %v717 = vpop.f32.mrf.mxu0
        %v718 = vpop.f32.mrf.mxu0
        %719 = vdwg.mxu0
        %720 = vmatprep.subr.bf16.mxu0 0
        %721 = vmatpush1.bf16.msra.mxu0 0
        %722 = vmatprep.subr.bf16.mxu0 0
        %723 = vmatpush1.bf16.msra.mxu0 0
        %724 = vmatprep.subr.bf16.mxu0 0
        %725 = vmatpush1.bf16.msra.mxu0 0
        %726 = vmatprep.subr.bf16.mxu0 0
        %727 = vmatpush1.bf16.msra.mxu0 0
        %728 = vmatprep.subr.bf16.mxu0 0
        %729 = vmatpush1.bf16.msra.mxu0 0
        %730 = vmatprep.subr.bf16.mxu0 0
        %731 = vmatpush1.bf16.msra.mxu0 0
        %732 = vmatprep.subr.bf16.mxu0 0
        %733 = vmatpush1.bf16.msra.mxu0 0
        %734 = vmatprep.subr.bf16.mxu0 0
        %735 = vmatpush1.bf16.msra.mxu0 %v677
        %736 = vmatprep.subr.bf16.mxu0 0
        %737 = vmatpush2.bf16.msra.mxu0 0
        %738 = vmatprep.subr.bf16.mxu0 0
        %739 = vmatpush2.bf16.msra.mxu0 0
        %740 = vmatprep.subr.bf16.mxu0 0
        %741 = vmatpush2.bf16.msra.mxu0 0
        %742 = vmatprep.subr.bf16.mxu0 0
        %743 = vmatpush2.bf16.msra.mxu0 0
        %744 = vmatprep.subr.bf16.mxu0 0
        %745 = vmatpush2.bf16.msra.mxu0 0
        %746 = vmatprep.subr.bf16.mxu0 0
        %747 = vmatpush2.bf16.msra.mxu0 0
        %748 = vmatprep.subr.bf16.mxu0 0
        %749 = vmatpush2.bf16.msra.mxu0 0
        %750 = vmatprep.subr.bf16.mxu0 0
        %751 = vmatpush2.bf16.msra.mxu0 0
        %752 = vmatprep.mubr.bf16.mxu0 0
        %753 = vmatmul.mubr.bf16.gmra.mxu0 %v668
        %v754 = vpop.f32.mrf.mxu0
        %v755 = vadd.f32 0.0, %v754
        %v756 = vpop.f32.mrf.mxu0
        %v757 = vpop.f32.mrf.mxu0
        %v758 = vpop.f32.mrf.mxu0
        %759 = vdwg.mxu0
        %v760 = vadd.f32 %v653, %v714
        %v761 = vadd.f32 %v654, %v716
        %v762 = vadd.f32 %v655, %v755
        %s763 = scalar_lea.vmem %s1, 20
        %v764 = vld [vmem:[%s763] sm:$0xf]
        %765 = vrot.lane.b32.xlu0 %v236, 108
        %v766 = vpop.permute.xlu0 %765
        %767 = vrot.lane.b32.xlu0 %v244, 108
        %v768 = vpop.permute.xlu0 %767
        %769 = vrot.lane.b32.xlu0 %v243, 108
        %v770 = vpop.permute.xlu0 %769
        %vm771 = vcmask 883712
        %v772 = vsel %vm771, %v766, %v768
        %v773 = vsel %vm771, %v768, %v770
        %v775 = vsel %vm254, %v764, 0
        %v778 = vsel %vm258, %v772, 0
        %v781 = vsel %vm258, %v773, 0
        %v784 = vsel %vm258, %v770, 0
        %786 = vmatprep.subr.bf16.mxu0 0
        %787 = vmatpush1.bf16.msra.mxu0 0
        %788 = vmatprep.subr.bf16.mxu0 0
        %789 = vmatpush1.bf16.msra.mxu0 0
        %790 = vmatprep.subr.bf16.mxu0 0
        %791 = vmatpush1.bf16.msra.mxu0 0
        %792 = vmatprep.subr.bf16.mxu0 0
        %793 = vmatpush1.bf16.msra.mxu0 0
        %794 = vmatprep.subr.bf16.mxu0 0
        %795 = vmatpush1.bf16.msra.mxu0 0
        %796 = vmatprep.subr.bf16.mxu0 0
        %797 = vmatpush1.bf16.msra.mxu0 0
        %798 = vmatprep.subr.bf16.mxu0 0
        %799 = vmatpush1.bf16.msra.mxu0 0
        %800 = vmatprep.subr.bf16.mxu0 %v781
        %801 = vmatpush1.bf16.msra.mxu0 %v778
        %802 = vmatprep.subr.bf16.mxu0 0
        %803 = vmatpush2.bf16.msra.mxu0 0
        %804 = vmatprep.subr.bf16.mxu0 0
        %805 = vmatpush2.bf16.msra.mxu0 0
        %806 = vmatprep.subr.bf16.mxu0 0
        %807 = vmatpush2.bf16.msra.mxu0 0
        %808 = vmatprep.subr.bf16.mxu0 0
        %809 = vmatpush2.bf16.msra.mxu0 0
        %810 = vmatprep.subr.bf16.mxu0 0
        %811 = vmatpush2.bf16.msra.mxu0 0
        %812 = vmatprep.subr.bf16.mxu0 0
        %813 = vmatpush2.bf16.msra.mxu0 0
        %814 = vmatprep.subr.bf16.mxu0 0
        %815 = vmatpush2.bf16.msra.mxu0 0
        %816 = vmatprep.subr.bf16.mxu0 0
        %817 = vmatpush2.bf16.msra.mxu0 0
        %818 = vmatprep.mubr.bf16.mxu0 0
        %819 = vmatmul.mubr.bf16.gmra.mxu0 %v775
        %v820 = vpop.f32.mrf.mxu0
        %v821 = vadd.f32 0.0, %v820
        %v822 = vpop.f32.mrf.mxu0
        %v823 = vadd.f32 0.0, %v822
        %v824 = vpop.f32.mrf.mxu0
        %v825 = vpop.f32.mrf.mxu0
        %826 = vdwg.mxu0
        %827 = vmatprep.subr.bf16.mxu0 0
        %828 = vmatpush1.bf16.msra.mxu0 0
        %829 = vmatprep.subr.bf16.mxu0 0
        %830 = vmatpush1.bf16.msra.mxu0 0
        %831 = vmatprep.subr.bf16.mxu0 0
        %832 = vmatpush1.bf16.msra.mxu0 0
        %833 = vmatprep.subr.bf16.mxu0 0
        %834 = vmatpush1.bf16.msra.mxu0 0
        %835 = vmatprep.subr.bf16.mxu0 0
        %836 = vmatpush1.bf16.msra.mxu0 0
        %837 = vmatprep.subr.bf16.mxu0 0
        %838 = vmatpush1.bf16.msra.mxu0 0
        %839 = vmatprep.subr.bf16.mxu0 0
        %840 = vmatpush1.bf16.msra.mxu0 0
        %841 = vmatprep.subr.bf16.mxu0 0
        %842 = vmatpush1.bf16.msra.mxu0 %v784
        %843 = vmatprep.subr.bf16.mxu0 0
        %844 = vmatpush2.bf16.msra.mxu0 0
        %845 = vmatprep.subr.bf16.mxu0 0
        %846 = vmatpush2.bf16.msra.mxu0 0
        %847 = vmatprep.subr.bf16.mxu0 0
        %848 = vmatpush2.bf16.msra.mxu0 0
        %849 = vmatprep.subr.bf16.mxu0 0
        %850 = vmatpush2.bf16.msra.mxu0 0
        %851 = vmatprep.subr.bf16.mxu0 0
        %852 = vmatpush2.bf16.msra.mxu0 0
        %853 = vmatprep.subr.bf16.mxu0 0
        %854 = vmatpush2.bf16.msra.mxu0 0
        %855 = vmatprep.subr.bf16.mxu0 0
        %856 = vmatpush2.bf16.msra.mxu0 0
        %857 = vmatprep.subr.bf16.mxu0 0
        %858 = vmatpush2.bf16.msra.mxu0 0
        %859 = vmatprep.mubr.bf16.mxu0 0
        %860 = vmatmul.mubr.bf16.gmra.mxu0 %v775
        %v861 = vpop.f32.mrf.mxu0
        %v862 = vadd.f32 0.0, %v861
        %v863 = vpop.f32.mrf.mxu0
        %v864 = vpop.f32.mrf.mxu0
        %v865 = vpop.f32.mrf.mxu0
        %866 = vdwg.mxu0
        %v867 = vadd.f32 %v760, %v821
        %v868 = vadd.f32 %v761, %v823
        %v869 = vadd.f32 %v762, %v862
        %s870 = scalar_lea.vmem %s1, 24
        %v871 = vld [vmem:[%s870] sm:$0xf]
        %872 = vrot.lane.b32.xlu0 %v236, 92
        %v873 = vpop.permute.xlu0 %872
        %874 = vrot.lane.b32.xlu0 %v244, 92
        %v875 = vpop.permute.xlu0 %874
        %876 = vrot.lane.b32.xlu0 %v243, 92
        %v877 = vpop.permute.xlu0 %876
        %vm878 = vcmask 752640
        %v879 = vsel %vm878, %v873, %v875
        %v880 = vsel %vm878, %v875, %v877
        %v882 = vsel %vm254, %v871, 0
        %v885 = vsel %vm258, %v879, 0
        %v888 = vsel %vm258, %v880, 0
        %v891 = vsel %vm258, %v877, 0
        %893 = vmatprep.subr.bf16.mxu0 0
        %894 = vmatpush1.bf16.msra.mxu0 0
        %895 = vmatprep.subr.bf16.mxu0 0
        %896 = vmatpush1.bf16.msra.mxu0 0
        %897 = vmatprep.subr.bf16.mxu0 0
        %898 = vmatpush1.bf16.msra.mxu0 0
        %899 = vmatprep.subr.bf16.mxu0 0
        %900 = vmatpush1.bf16.msra.mxu0 0
        %901 = vmatprep.subr.bf16.mxu0 0
        %902 = vmatpush1.bf16.msra.mxu0 0
        %903 = vmatprep.subr.bf16.mxu0 0
        %904 = vmatpush1.bf16.msra.mxu0 0
        %905 = vmatprep.subr.bf16.mxu0 0
        %906 = vmatpush1.bf16.msra.mxu0 0
        %907 = vmatprep.subr.bf16.mxu0 %v888
        %908 = vmatpush1.bf16.msra.mxu0 %v885
        %909 = vmatprep.subr.bf16.mxu0 0
        %910 = vmatpush2.bf16.msra.mxu0 0
        %911 = vmatprep.subr.bf16.mxu0 0
        %912 = vmatpush2.bf16.msra.mxu0 0
        %913 = vmatprep.subr.bf16.mxu0 0
        %914 = vmatpush2.bf16.msra.mxu0 0
        %915 = vmatprep.subr.bf16.mxu0 0
        %916 = vmatpush2.bf16.msra.mxu0 0
        %917 = vmatprep.subr.bf16.mxu0 0
        %918 = vmatpush2.bf16.msra.mxu0 0
        %919 = vmatprep.subr.bf16.mxu0 0
        %920 = vmatpush2.bf16.msra.mxu0 0
        %921 = vmatprep.subr.bf16.mxu0 0
        %922 = vmatpush2.bf16.msra.mxu0 0
        %923 = vmatprep.subr.bf16.mxu0 0
        %924 = vmatpush2.bf16.msra.mxu0 0
        %925 = vmatprep.mubr.bf16.mxu0 0
        %926 = vmatmul.mubr.bf16.gmra.mxu0 %v882
        %v927 = vpop.f32.mrf.mxu0
        %v928 = vadd.f32 0.0, %v927
        %v929 = vpop.f32.mrf.mxu0
        %v930 = vadd.f32 0.0, %v929
        %v931 = vpop.f32.mrf.mxu0
        %v932 = vpop.f32.mrf.mxu0
        %933 = vdwg.mxu0
        %934 = vmatprep.subr.bf16.mxu0 0
        %935 = vmatpush1.bf16.msra.mxu0 0
        %936 = vmatprep.subr.bf16.mxu0 0
        %937 = vmatpush1.bf16.msra.mxu0 0
        %938 = vmatprep.subr.bf16.mxu0 0
        %939 = vmatpush1.bf16.msra.mxu0 0
        %940 = vmatprep.subr.bf16.mxu0 0
        %941 = vmatpush1.bf16.msra.mxu0 0
        %942 = vmatprep.subr.bf16.mxu0 0
        %943 = vmatpush1.bf16.msra.mxu0 0
        %944 = vmatprep.subr.bf16.mxu0 0
        %945 = vmatpush1.bf16.msra.mxu0 0
        %946 = vmatprep.subr.bf16.mxu0 0
        %947 = vmatpush1.bf16.msra.mxu0 0
        %948 = vmatprep.subr.bf16.mxu0 0
        %949 = vmatpush1.bf16.msra.mxu0 %v891
        %950 = vmatprep.subr.bf16.mxu0 0
        %951 = vmatpush2.bf16.msra.mxu0 0
        %952 = vmatprep.subr.bf16.mxu0 0
        %953 = vmatpush2.bf16.msra.mxu0 0
        %954 = vmatprep.subr.bf16.mxu0 0
        %955 = vmatpush2.bf16.msra.mxu0 0
        %956 = vmatprep.subr.bf16.mxu0 0
        %957 = vmatpush2.bf16.msra.mxu0 0
        %958 = vmatprep.subr.bf16.mxu0 0
        %959 = vmatpush2.bf16.msra.mxu0 0
        %960 = vmatprep.subr.bf16.mxu0 0
        %961 = vmatpush2.bf16.msra.mxu0 0
        %962 = vmatprep.subr.bf16.mxu0 0
        %963 = vmatpush2.bf16.msra.mxu0 0
        %964 = vmatprep.subr.bf16.mxu0 0
        %965 = vmatpush2.bf16.msra.mxu0 0
        %966 = vmatprep.mubr.bf16.mxu0 0
        %967 = vmatmul.mubr.bf16.gmra.mxu0 %v882
        %v968 = vpop.f32.mrf.mxu0
        %v969 = vadd.f32 0.0, %v968
        %v970 = vpop.f32.mrf.mxu0
        %v971 = vpop.f32.mrf.mxu0
        %v972 = vpop.f32.mrf.mxu0
        %973 = vdwg.mxu0
        %v974 = vadd.f32 %v867, %v928
        %v975 = vadd.f32 %v868, %v930
        %v976 = vadd.f32 %v869, %v969
        %s977 = scalar_lea.vmem %s1, 28
        %v978 = vld [vmem:[%s977] sm:$0xf]
        %979 = vrot.lane.b32.xlu0 %v236, 91
        %v980 = vpop.permute.xlu0 %979
        %981 = vrot.lane.b32.xlu0 %v244, 91
        %v982 = vpop.permute.xlu0 %981
        %983 = vrot.lane.b32.xlu0 %v243, 91
        %v984 = vpop.permute.xlu0 %983
        %vm985 = vcmask 744448
        %v986 = vsel %vm985, %v980, %v982
        %v987 = vsel %vm985, %v982, %v984
        %v989 = vsel %vm254, %v978, 0
        %v992 = vsel %vm258, %v986, 0
        %v995 = vsel %vm258, %v987, 0
        %v998 = vsel %vm258, %v984, 0
        %1000 = vmatprep.subr.bf16.mxu0 0
        %1001 = vmatpush1.bf16.msra.mxu0 0
        %1002 = vmatprep.subr.bf16.mxu0 0
        %1003 = vmatpush1.bf16.msra.mxu0 0
        %1004 = vmatprep.subr.bf16.mxu0 0
        %1005 = vmatpush1.bf16.msra.mxu0 0
        %1006 = vmatprep.subr.bf16.mxu0 0
        %1007 = vmatpush1.bf16.msra.mxu0 0
        %1008 = vmatprep.subr.bf16.mxu0 0
        %1009 = vmatpush1.bf16.msra.mxu0 0
        %1010 = vmatprep.subr.bf16.mxu0 0
        %1011 = vmatpush1.bf16.msra.mxu0 0
        %1012 = vmatprep.subr.bf16.mxu0 0
        %1013 = vmatpush1.bf16.msra.mxu0 0
        %1014 = vmatprep.subr.bf16.mxu0 %v995
        %1015 = vmatpush1.bf16.msra.mxu0 %v992
        %1016 = vmatprep.subr.bf16.mxu0 0
        %1017 = vmatpush2.bf16.msra.mxu0 0
        %1018 = vmatprep.subr.bf16.mxu0 0
        %1019 = vmatpush2.bf16.msra.mxu0 0
        %1020 = vmatprep.subr.bf16.mxu0 0
        %1021 = vmatpush2.bf16.msra.mxu0 0
        %1022 = vmatprep.subr.bf16.mxu0 0
        %1023 = vmatpush2.bf16.msra.mxu0 0
        %1024 = vmatprep.subr.bf16.mxu0 0
        %1025 = vmatpush2.bf16.msra.mxu0 0
        %1026 = vmatprep.subr.bf16.mxu0 0
        %1027 = vmatpush2.bf16.msra.mxu0 0
        %1028 = vmatprep.subr.bf16.mxu0 0
        %1029 = vmatpush2.bf16.msra.mxu0 0
        %1030 = vmatprep.subr.bf16.mxu0 0
        %1031 = vmatpush2.bf16.msra.mxu0 0
        %1032 = vmatprep.mubr.bf16.mxu0 0
        %1033 = vmatmul.mubr.bf16.gmra.mxu0 %v989
        %v1034 = vpop.f32.mrf.mxu0
        %v1035 = vadd.f32 0.0, %v1034
        %v1036 = vpop.f32.mrf.mxu0
        %v1037 = vadd.f32 0.0, %v1036
        %v1038 = vpop.f32.mrf.mxu0
        %v1039 = vpop.f32.mrf.mxu0
        %1040 = vdwg.mxu0
        %1041 = vmatprep.subr.bf16.mxu0 0
        %1042 = vmatpush1.bf16.msra.mxu0 0
        %1043 = vmatprep.subr.bf16.mxu0 0
        %1044 = vmatpush1.bf16.msra.mxu0 0
        %1045 = vmatprep.subr.bf16.mxu0 0
        %1046 = vmatpush1.bf16.msra.mxu0 0
        %1047 = vmatprep.subr.bf16.mxu0 0
        %1048 = vmatpush1.bf16.msra.mxu0 0
        %1049 = vmatprep.subr.bf16.mxu0 0
        %1050 = vmatpush1.bf16.msra.mxu0 0
        %1051 = vmatprep.subr.bf16.mxu0 0
        %1052 = vmatpush1.bf16.msra.mxu0 0
        %1053 = vmatprep.subr.bf16.mxu0 0
        %1054 = vmatpush1.bf16.msra.mxu0 0
        %1055 = vmatprep.subr.bf16.mxu0 0
        %1056 = vmatpush1.bf16.msra.mxu0 %v998
        %1057 = vmatprep.subr.bf16.mxu0 0
        %1058 = vmatpush2.bf16.msra.mxu0 0
        %1059 = vmatprep.subr.bf16.mxu0 0
        %1060 = vmatpush2.bf16.msra.mxu0 0
        %1061 = vmatprep.subr.bf16.mxu0 0
        %1062 = vmatpush2.bf16.msra.mxu0 0
        %1063 = vmatprep.subr.bf16.mxu0 0
        %1064 = vmatpush2.bf16.msra.mxu0 0
        %1065 = vmatprep.subr.bf16.mxu0 0
        %1066 = vmatpush2.bf16.msra.mxu0 0
        %1067 = vmatprep.subr.bf16.mxu0 0
        %1068 = vmatpush2.bf16.msra.mxu0 0
        %1069 = vmatprep.subr.bf16.mxu0 0
        %1070 = vmatpush2.bf16.msra.mxu0 0
        %1071 = vmatprep.subr.bf16.mxu0 0
        %1072 = vmatpush2.bf16.msra.mxu0 0
        %1073 = vmatprep.mubr.bf16.mxu0 0
        %1074 = vmatmul.mubr.bf16.gmra.mxu0 %v989
        %v1075 = vpop.f32.mrf.mxu0
        %v1076 = vadd.f32 0.0, %v1075
        %v1077 = vpop.f32.mrf.mxu0
        %v1078 = vpop.f32.mrf.mxu0
        %v1079 = vpop.f32.mrf.mxu0
        %1080 = vdwg.mxu0
        %v1081 = vadd.f32 %v974, %v1035
        %v1082 = vadd.f32 %v975, %v1037
        %v1083 = vadd.f32 %v976, %v1076
        %s1084 = scalar_lea.vmem %s1, 32
        %v1085 = vld [vmem:[%s1084] sm:$0xf]
        %1086 = vrot.lane.b32.xlu0 %v236, 90
        %v1087 = vpop.permute.xlu0 %1086
        %1088 = vrot.lane.b32.xlu0 %v244, 90
        %v1089 = vpop.permute.xlu0 %1088
        %1090 = vrot.lane.b32.xlu0 %v243, 90
        %v1091 = vpop.permute.xlu0 %1090
        %vm1092 = vcmask 736256
        %v1093 = vsel %vm1092, %v1087, %v1089
        %v1094 = vsel %vm1092, %v1089, %v1091
        %v1096 = vsel %vm254, %v1085, 0
        %v1099 = vsel %vm258, %v1093, 0
        %v1102 = vsel %vm258, %v1094, 0
        %v1105 = vsel %vm258, %v1091, 0
        %1107 = vmatprep.subr.bf16.mxu0 0
        %1108 = vmatpush1.bf16.msra.mxu0 0
        %1109 = vmatprep.subr.bf16.mxu0 0
        %1110 = vmatpush1.bf16.msra.mxu0 0
        %1111 = vmatprep.subr.bf16.mxu0 0
        %1112 = vmatpush1.bf16.msra.mxu0 0
        %1113 = vmatprep.subr.bf16.mxu0 0
        %1114 = vmatpush1.bf16.msra.mxu0 0
        %1115 = vmatprep.subr.bf16.mxu0 0
        %1116 = vmatpush1.bf16.msra.mxu0 0
        %1117 = vmatprep.subr.bf16.mxu0 0
        %1118 = vmatpush1.bf16.msra.mxu0 0
        %1119 = vmatprep.subr.bf16.mxu0 0
        %1120 = vmatpush1.bf16.msra.mxu0 0
        %1121 = vmatprep.subr.bf16.mxu0 %v1102
        %1122 = vmatpush1.bf16.msra.mxu0 %v1099
        %1123 = vmatprep.subr.bf16.mxu0 0
        %1124 = vmatpush2.bf16.msra.mxu0 0
        %1125 = vmatprep.subr.bf16.mxu0 0
        %1126 = vmatpush2.bf16.msra.mxu0 0
        %1127 = vmatprep.subr.bf16.mxu0 0
        %1128 = vmatpush2.bf16.msra.mxu0 0
        %1129 = vmatprep.subr.bf16.mxu0 0
        %1130 = vmatpush2.bf16.msra.mxu0 0
        %1131 = vmatprep.subr.bf16.mxu0 0
        %1132 = vmatpush2.bf16.msra.mxu0 0
        %1133 = vmatprep.subr.bf16.mxu0 0
        %1134 = vmatpush2.bf16.msra.mxu0 0
        %1135 = vmatprep.subr.bf16.mxu0 0
        %1136 = vmatpush2.bf16.msra.mxu0 0
        %1137 = vmatprep.subr.bf16.mxu0 0
        %1138 = vmatpush2.bf16.msra.mxu0 0
        %1139 = vmatprep.mubr.bf16.mxu0 0
        %1140 = vmatmul.mubr.bf16.gmra.mxu0 %v1096
        %v1141 = vpop.f32.mrf.mxu0
        %v1142 = vadd.f32 0.0, %v1141
        %v1143 = vpop.f32.mrf.mxu0
        %v1144 = vadd.f32 0.0, %v1143
        %v1145 = vpop.f32.mrf.mxu0
        %v1146 = vpop.f32.mrf.mxu0
        %1147 = vdwg.mxu0
        %1148 = vmatprep.subr.bf16.mxu0 0
        %1149 = vmatpush1.bf16.msra.mxu0 0
        %1150 = vmatprep.subr.bf16.mxu0 0
        %1151 = vmatpush1.bf16.msra.mxu0 0
        %1152 = vmatprep.subr.bf16.mxu0 0
        %1153 = vmatpush1.bf16.msra.mxu0 0
        %1154 = vmatprep.subr.bf16.mxu0 0
        %1155 = vmatpush1.bf16.msra.mxu0 0
        %1156 = vmatprep.subr.bf16.mxu0 0
        %1157 = vmatpush1.bf16.msra.mxu0 0
        %1158 = vmatprep.subr.bf16.mxu0 0
        %1159 = vmatpush1.bf16.msra.mxu0 0
        %1160 = vmatprep.subr.bf16.mxu0 0
        %1161 = vmatpush1.bf16.msra.mxu0 0
        %1162 = vmatprep.subr.bf16.mxu0 0
        %1163 = vmatpush1.bf16.msra.mxu0 %v1105
        %1164 = vmatprep.subr.bf16.mxu0 0
        %1165 = vmatpush2.bf16.msra.mxu0 0
        %1166 = vmatprep.subr.bf16.mxu0 0
        %1167 = vmatpush2.bf16.msra.mxu0 0
        %1168 = vmatprep.subr.bf16.mxu0 0
        %1169 = vmatpush2.bf16.msra.mxu0 0
        %1170 = vmatprep.subr.bf16.mxu0 0
        %1171 = vmatpush2.bf16.msra.mxu0 0
        %1172 = vmatprep.subr.bf16.mxu0 0
        %1173 = vmatpush2.bf16.msra.mxu0 0
        %1174 = vmatprep.subr.bf16.mxu0 0
        %1175 = vmatpush2.bf16.msra.mxu0 0
        %1176 = vmatprep.subr.bf16.mxu0 0
        %1177 = vmatpush2.bf16.msra.mxu0 0
        %1178 = vmatprep.subr.bf16.mxu0 0
        %1179 = vmatpush2.bf16.msra.mxu0 0
        %1180 = vmatprep.mubr.bf16.mxu0 0
        %1181 = vmatmul.mubr.bf16.gmra.mxu0 %v1096
        %v1182 = vpop.f32.mrf.mxu0
        %v1183 = vadd.f32 0.0, %v1182
        %v1184 = vpop.f32.mrf.mxu0
        %v1185 = vpop.f32.mrf.mxu0
        %v1186 = vpop.f32.mrf.mxu0
        %1187 = vdwg.mxu0
        %v1188 = vadd.f32 %v1081, %v1142
        %v1189 = vadd.f32 %v1082, %v1144
        %v1190 = vadd.f32 %v1083, %v1183
        %v1191 = vld [vmem:[%s4] sm:$0x7]
        %v1193 = vlaneseq
        %v1194 = vshrl.u32 %v1193, 7
        %v1195 = vsub.s32 0, %v1194
        %v1196 = vrot.slane %v1191, %v1195
        %v1197 = vlaneseq
        %v1198 = vshrl.u32 %v1197, 7
        %v1199 = vsub.s32 1, %v1198
        %v1200 = vrot.slane %v1191, %v1199
        %v1201 = vlaneseq
        %v1202 = vshrl.u32 %v1201, 7
        %v1203 = vsub.s32 2, %v1202
        %v1204 = vrot.slane %v1191, %v1203
        %v1208 = vmul.f32 %v1188, %v1196
        %v1209 = vmul.f32 %v1189, %v1200
        %v1210 = vmul.f32 %v1190, %v1204
        %v1211 = vadd.f32 %v1208, %v1209
        %vm1212 = vcmask 261120
        %v1213 = vsel %vm1212, %v1210, 0.0
        %v1214 = vadd.f32 %v1211, %v1213
        %1215 = vadd.xlane.f32.xlu0 %v1214
        %v1216 = vpop.xlane.xlu0 %1215
        %v1217 = vmul.f32 %v1216, 0.00390625
        %v1218 = vsub.f32 %v1188, %v1217
        %v1219 = vsub.f32 %v1189, %v1217
        %v1220 = vsub.f32 %v1190, %v1217
        %v1221 = vmul.f32 %v1218, %v1218
        %v1222 = vmul.f32 %v1219, %v1219
        %v1223 = vmul.f32 %v1220, %v1220
        %v1224 = vmul.f32 %v1221, %v1196
        %v1225 = vmul.f32 %v1222, %v1200
        %v1226 = vmul.f32 %v1223, %v1204
        %v1227 = vadd.f32 %v1224, %v1225
        %v1228 = vsel %vm1212, %v1226, 0.0
        %v1229 = vadd.f32 %v1227, %v1228
        %1230 = vadd.xlane.f32.xlu0 %v1229
        %v1231 = vpop.xlane.xlu0 %1230
        %v1232 = vmul.f32 %v1231, 0.00390625
        %v1233 = vld [vmem:[%s2] sm:$0xff]
        %v1234 = vadd.f32 %v1232, 1e-05
        %v1235 = vrsqrt.pop %v1234
        %v1236 = vmul.f32 %v1233, %v1235
        %v1237 = vld [vmem:[%s3] sm:$0xff]
        %v1238 = vmul.f32 %v1217, %v1236
        %v1239 = vsub.f32 %v1237, %v1238
        %1241 = vset.pattern.permute.xlu0 0
        %1242 = vperm.xlu0 %1241, %v1236
        %v1243 = vpop.permute.xlu0 %1242
        %v1245 = vmul.f32 %v1188, %v1243
        %v1246 = vmul.f32 %v1189, %v1243
        %v1247 = vmul.f32 %v1190, %v1243
        %1249 = vset.pattern.permute.xlu0 0
        %1250 = vperm.xlu0 %1249, %v1239
        %v1251 = vpop.permute.xlu0 %1250
        %v1253 = vadd.f32 %v1245, %v1251
        %v1254 = vadd.f32 %v1246, %v1251
        %v1255 = vadd.f32 %v1247, %v1251
        %v1256 = vmax.f32 %v1253, 0.0
        %v1257 = vmax.f32 %v1254, 0.0
        %v1258 = vmax.f32 %v1255, 0.0
        %1259 = vst [vmem:[%s217] sm:$0xff] %v1256
        %1260 = vst [vmem:[%s217 + $0x8] sm:$0xff] %v1257
        %1261 = vst.msk [vmem:[%s217 + $0x10] sm:$0xff] %vm1212, %v1258
        %s1262 = sand.u32 %s137, 1
        %s1263 = scalar_lea.sflag [#allocation3], %s1262
        %s1264 = sand.u32 %s137, 1
        %s1265 = smul.addr %s1264, 24
        %s1266 = scalar_lea.vmem [#allocation2], %s1265
        // Predicated region
        $region41: #{tpu_custom_call.1} parent=39 // pred_check
          %p1267 = pneg %p147
        $region42: #{tpu_custom_call.1} parent=39 // pred_check_branch
          %1269 = sbr.rel (%p1267) target = $region44
        $region43: #{tpu_custom_call.1} parent=39 // pred_region
          %s1271 = ssub.s32 384, 384
          %1272 = vsyncadd %s1263, %s1271
          %s1273 = smul.addr %s19, 3
          %s1274 = smul.addr %s1273, 128
          %s1275 = scalar_lea.hbm %s5, %s1274
          %s1277 = sshll.u32 %s1266, 4
          %s1278 = int_to_ptr.vmem [resolvable:$true] %s1277
          %1280 = dma.vmem_to_hbm [thread:$0]  %s1278, 384, %s1275, %s1263
        $region44: #{tpu_custom_call.1} parent=39 // pred_fallthru
          _
      $region40: #{tpu_custom_call.1} parent=5 // pred_fallthru
        _
      %p1281 = scmp.le.s32.totalorder 2, %s14
      // Predicated region
      $region45: #{tpu_custom_call.1} parent=5 // pred_check
        %p1282 = pneg %p1281
      $region46: #{tpu_custom_call.1} parent=5 // pred_check_branch
        %1284 = sbr.rel (%p1282) target = $region48
      $region47: #{tpu_custom_call.1} parent=5 // pred_region
        %s1285 = ssub.s32 %s14, 2
        // Predicated region
        $region49: #{tpu_custom_call.1} parent=47 // pred_check
          %p1286 = pneg %p153
        $region50: #{tpu_custom_call.1} parent=47 // pred_check_branch
          %1288 = sbr.rel (%p1286) target = $region52
        $region51: #{tpu_custom_call.1} parent=47 // pred_region
          %s1289 = sand.u32 %s138, 1
          %s1290 = scalar_lea.sflag [#allocation3], %s1289
          %s1291 = sand.u32 %s138, 1
          %s1292 = smul.addr %s1291, 24
          %s1293 = scalar_lea.vmem [#allocation2], %s1292
          %1294 = dma.done %s1290, 384
        $region52: #{tpu_custom_call.1} parent=47 // pred_fallthru
          _
      $region48: #{tpu_custom_call.1} parent=5 // pred_fallthru
        _
    $region6: #{tpu_custom_call.1} parent=1 // loop_footer
      %s18 = sadd.s32 1, %s14
    $region7: #{tpu_custom_call.1} parent=1 // loop_footer_branch
      %13 = sbr.rel target = $region3
    $region8: #{tpu_custom_call.1} parent=1 // loop_exit
      _
    %1295 = vsyncpa [#allocation3], 1
    %s1296 = scalar_lea.sflag [#allocation3], 1
    %1297 = vsyncpa %s1296, 1

</llo_original>
